<compile_context>
chip_gen: v7x
topology: tpu7x:2x2x1
jax: 0.10.0
libtpu: 0.0.40
codegen_flags: <defaults>
</compile_context>

<pallas_src>
import math
import functools

import jax
import jax.numpy as jnp
from jax import lax
from jax.experimental import pallas as pl
from jax.experimental.pallas import tpu as pltpu


_NEG_INF = -1e30   # finite mask value (avoids exp(-inf - -inf) NaN hazard)


def _pick_tile(n, cap, align):
    """Largest multiple of `align` <= cap dividing n, else n (full extent)."""
    if n <= cap:
        return n
    t = (cap // align) * align
    while t >= align:
        if n % t == 0:
            return t
        t -= align
    # TODO(synk): pad / mask ragged tails instead of falling back to a full-extent
    # block (a huge T would otherwise defeat pipelining and can bust VMEM).
    return n


# ----------------------------- QKV projection ------------------------------ #

def qkv_kernel(x_ref, w_ref, o_ref):
    """x_ref: (tm, C) f32, w_ref: (C, tn) bf16, o_ref: (tm, tn) bf16."""
    o_ref[...] = jnp.dot(
        x_ref[...].astype(jnp.bfloat16), w_ref[...],
        preferred_element_type=jnp.float32).astype(o_ref.dtype)


def run_qkv_proj(x2d, wqkv, *, tm_cap=256, tn_cap=1536):
    M, C = x2d.shape
    C3 = wqkv.shape[1]
    tm = _pick_tile(M, tm_cap, 8)       # >=256 rows fills the 256-row MXU (v6e/v7x)
    tn = _pick_tile(C3, tn_cap, 128)    # N-tile the weight: footprint independent of 3C
    grid = (C3 // tn, M // tm)          # M innermost -> weight slab stays resident

    return pl.pallas_call(
        qkv_kernel,
        out_shape=jax.ShapeDtypeStruct((M, C3), jnp.bfloat16),
        grid_spec=pltpu.PrefetchScalarGridSpec(
            num_scalar_prefetch=0,
            grid=grid,
            in_specs=[
                pl.BlockSpec((tm, C), lambda n, m: (m, 0)),
                # Weight slab: index constant across the inner m axis, so Pallas
                # keeps it resident (DMA'd once per n slab).
                # TODO(synk): pipeline_mode=pl.Buffered(1) for this grid-invariant
                # slab once single-buffering is stable in this JAX rev.
                pl.BlockSpec((C, tn), lambda n, m: (0, n)),
            ],
            out_specs=pl.BlockSpec((tm, tn), lambda n, m: (m, n)),
        ),
        compiler_params=pltpu.CompilerParams(
            dimension_semantics=("parallel", "parallel"),
            vmem_limit_bytes=48 * 1024 * 1024),
    )(x2d, wqkv)


# ----------------------------- flash attention ----------------------------- #

def flash_attn_kernel(q_ref, k_ref, v_ref, o_ref, m_sc, l_sc, acc_sc, *, tile):
    """Online-softmax causal attention.

    q_ref/k_ref/v_ref: (1, tile, 1, H, Dh) bf16 slabs of the packed QKV tensor.
    o_ref:             (1, tile, H, Dh)    bf16 (free-reshaped to (B, T, C) outside).
    Scratch: m/l (H, tile) f32, acc (H, tile, Dh) f32.
    """
    qi = pl.program_id(1)
    ki = pl.program_id(2)

    @pl.when(ki == 0)
    def _init():
        m_sc[...] = jnp.full(m_sc.shape, _NEG_INF, m_sc.dtype)
        l_sc[...] = jnp.zeros(l_sc.shape, l_sc.dtype)
        acc_sc[...] = jnp.zeros(acc_sc.shape, acc_sc.dtype)

    row0 = qi * tile                              # first query row of this tile
    col0 = ki * tile                              # first key column of this tile
    processed = col0 <= row0 + (tile - 1)         # tile not entirely above diagonal
    straddles = col0 + (tile - 1) > row0          # tile contains masked entries

    def _update(apply_mask):
        # Head-major views: (t, H, Dh) -> (H, t, Dh) is in-VMEM layout plumbing
        # (XLU work hidden under the MXU), not an HBM round trip.
        q = jnp.swapaxes(q_ref[0, :, 0], 0, 1)    # (H, tile, Dh) bf16 (scale in Wq)
        k = jnp.swapaxes(k_ref[0, :, 0], 0, 1)
        v = jnp.swapaxes(v_ref[0, :, 0], 0, 1)

        # Batched over heads, contraction over Dh.
        s = jnp.einsum("hqd,hkd->hqk", q, k,
                       preferred_element_type=jnp.float32)      # (H, tile, tile)

        if apply_mask:   # only diagonal-straddling tiles pay for the mask
            rows = row0 + lax.broadcasted_iota(jnp.int32, (tile, tile), 0)
            cols = col0 + lax.broadcasted_iota(jnp.int32, (tile, tile), 1)
            s = jnp.where((cols <= rows)[None, :, :], s, _NEG_INF)

        m_prev = m_sc[...]                                       # (H, tile)
        m_new = jnp.maximum(m_prev, jnp.max(s, axis=-1))
        alpha = jnp.exp(m_prev - m_new)
        p = jnp.exp(s - m_new[:, :, None])
        l_sc[...] = alpha * l_sc[...] + jnp.sum(p, axis=-1)
        acc_sc[...] = alpha[:, :, None] * acc_sc[...] + jnp.einsum(
            "hqk,hkd->hqd", p.astype(v.dtype), v,
            preferred_element_type=jnp.float32)
        m_sc[...] = m_new

    @pl.when(jnp.logical_and(processed, jnp.logical_not(straddles)))
    def _below_diagonal():
        _update(apply_mask=False)

    @pl.when(jnp.logical_and(processed, straddles))
    def _on_diagonal():
        _update(apply_mask=True)

    @pl.when(ki == pl.num_programs(2) - 1)
    def _finalize():
        inv_l = pl.reciprocal(l_sc[...], approx=True)            # EUP slot
        o = acc_sc[...] * inv_l[:, :, None]                      # (H, tile, Dh) f32
        o_ref[0] = jnp.swapaxes(o, 0, 1).astype(o_ref.dtype)     # (tile, H, Dh) bf16


def run_flash_attention(qkv, n_heads, *, tile_cap=256):
    """qkv: (B, T, 3, H, Dh) bf16 -> (B, T, H, Dh) bf16."""
    B, T, three, H, Dh = qkv.shape
    assert three == 3 and H == n_heads
    tile = _pick_tile(T, tile_cap, 8)    # tq == tk (guards fully-masked-row hazard)
    nt = T // tile
    kern = functools.partial(flash_attn_kernel, tile=tile)

    return pl.pallas_call(
        kern,
        out_shape=jax.ShapeDtypeStruct((B, T, H, Dh), jnp.bfloat16),
        grid_spec=pltpu.PrefetchScalarGridSpec(
            num_scalar_prefetch=0,
            grid=(B, nt, nt),
            in_specs=[
                pl.BlockSpec((1, tile, 1, H, Dh),
                             lambda b, qi, ki: (b, qi, 0, 0, 0)),
                # Clamp past-diagonal KV tiles to the last needed block index:
                # identical consecutive indices make Pallas elide the DMA, so the
                # causal skip also skips the HBM fetch.
                pl.BlockSpec((1, tile, 1, H, Dh),
                             lambda b, qi, ki: (b, jnp.minimum(ki, qi), 1, 0, 0)),
                pl.BlockSpec((1, tile, 1, H, Dh),
                             lambda b, qi, ki: (b, jnp.minimum(ki, qi), 2, 0, 0)),
            ],
            out_specs=pl.BlockSpec((1, tile, H, Dh),
                                   lambda b, qi, ki: (b, qi, 0, 0)),
            scratch_shapes=[
                pltpu.VMEM((H, tile), jnp.float32),       # running max  m
                pltpu.VMEM((H, tile), jnp.float32),       # running sum  l
                pltpu.VMEM((H, tile, Dh), jnp.float32),   # output accumulator
            ],
        ),
        compiler_params=pltpu.CompilerParams(
            # TODO(synk): mark the batch axis pltpu.CORE_PARALLEL (or core_map) for
            # v7x's 2 TensorCores; plain "parallel" kept here for portability.
            dimension_semantics=("parallel", "parallel", "arbitrary"),
            vmem_limit_bytes=48 * 1024 * 1024),
    )(qkv, qkv, qkv)


# ----------------------------- module forward ------------------------------ #

def multi_head_attention(norm_inputs, wq, wk, wv, n_heads):
    """norm_inputs: (B, T, C) f32; wq/wk/wv: (C, C) [in, out] -> (B, T, C) bf16."""
    B, T, C = norm_inputs.shape
    assert C % n_heads == 0
    Dh = C // n_heads

    # Fold the 1/sqrt(Dh) attention scale into the Q weight (zero runtime cost)
    # and pack [q|k|v] into one (C, 3C) bf16 weight.
    scale = 1.0 / math.sqrt(Dh)
    wqkv = jnp.concatenate([wq * scale, wk, wv], axis=1).astype(jnp.bfloat16)

    x2d = norm_inputs.reshape(B * T, C)                  # free reshape
    qkv = run_qkv_proj(x2d, wqkv)                        # (B*T, 3C) bf16
    # Contiguous splits only — no XLA transposes of activations anywhere.
    qkv = qkv.reshape(B, T, 3, n_heads, Dh)
    out = run_flash_attention(qkv, n_heads)              # (B, T, H, Dh) bf16
    return out.reshape(B, T, C)                          # free reshape


# ----------------------------- reference (pure JAX, f32) ------------------- #

def ref_mha(x, wq, wk, wv, n_heads):
    B, T, C = x.shape
    Dh = C // n_heads
    hp = lax.Precision.HIGHEST
    q = jnp.einsum("btc,cd->btd", x, wq, precision=hp)
    k = jnp.einsum("btc,cd->btd", x, wk, precision=hp)
    v = jnp.einsum("btc,cd->btd", x, wv, precision=hp)
    q = q.reshape(B, T, n_heads, Dh).transpose(0, 2, 1, 3)
    k = k.reshape(B, T, n_heads, Dh).transpose(0, 2, 1, 3)
    v = v.reshape(B, T, n_heads, Dh).transpose(0, 2, 1, 3)
    s = jnp.einsum("bhqd,bhkd->bhqk", q, k, precision=hp) / math.sqrt(Dh)
    mask = jnp.tril(jnp.ones((T, T), bool))
    s = jnp.where(mask, s, -jnp.inf)
    p = jax.nn.softmax(s, axis=-1)
    o = jnp.einsum("bhqk,bhkd->bhqd", p, v, precision=hp)
    return o.transpose(0, 2, 1, 3).reshape(B, T, C)


# ----------------------------- main ----------------------------------------- #

if __name__ == "__main__":
    B, T, C, n_heads = 2, 512, 128, 4     # small but multi-tile (2x2 KV grid, tile=256)

    key = jax.random.PRNGKey(0)
    kx, kq, kk, kv = jax.random.split(key, 4)
    x = jax.random.normal(kx, (B, T, C), jnp.float32)
    wq = 0.1 * jax.random.normal(kq, (C, C), jnp.float32)
    wk = 0.1 * jax.random.normal(kk, (C, C), jnp.float32)
    wv = 0.1 * jax.random.normal(kv, (C, C), jnp.float32)

    out = multi_head_attention(x, wq, wk, wv, n_heads)
    out = jax.block_until_ready(out)

    ref = jax.block_until_ready(ref_mha(x, wq, wk, wv, n_heads))
    assert out.shape == (B, T, C)
    out_f32 = out.astype(jnp.float32)
    max_err = float(jnp.max(jnp.abs(out_f32 - ref)))
    assert jnp.allclose(out_f32, ref, atol=3e-2, rtol=3e-2), max_err

    print("KERNEL_OK")
</pallas_src>

<mosaic_0001>
module attributes {stable_mosaic.version = 11 : i64} {
  func.func @qkv_kernel(%arg0: i32, %arg1: i32, %arg2: memref<256x128xf32, #tpu.memory_space<vmem>>, %arg3: memref<128x384xbf16, #tpu.memory_space<vmem>>, %arg4: memref<256x384xbf16, #tpu.memory_space<vmem>>) attributes {dimension_semantics = [#tpu.dimension_semantics<parallel>, #tpu.dimension_semantics<parallel>], iteration_bounds = array<i64: 1, 4>, scalar_prefetch = 0 : i64, scratch_operands = 0 : i64, tpu.core_type = #tpu.core_type<tc>, window_params = [{transform_indices = @transform_0, window_bounds = array<i64: 256, 128>}, {transform_indices = @transform_1, window_bounds = array<i64: 128, 384>}, {transform_indices = @transform_2, window_bounds = array<i64: 256, 384>}]} {
    %c0 = arith.constant 0 : index
    %c0_0 = arith.constant 0 : index
    %0 = vector.load %arg2[%c0, %c0_0] : memref<256x128xf32, #tpu.memory_space<vmem>>, vector<256x128xf32>
    %1 = arith.truncf %0 : vector<256x128xf32> to vector<256x128xbf16>
    %c0_1 = arith.constant 0 : index
    %c0_2 = arith.constant 0 : index
    %2 = vector.load %arg3[%c0_1, %c0_2] : memref<128x384xbf16, #tpu.memory_space<vmem>>, vector<128x384xbf16>
    %cst = arith.constant dense<0.000000e+00> : vector<256x384xf32>
    %3 = tpu.matmul %1, %2, %cst {dimension_numbers = #tpu.dot_dimension_numbers<[1], [0], [0], [1], [0, 0, 1, 1], [], []>} : vector<256x128xbf16>, vector<128x384xbf16>, vector<256x384xf32> -> vector<256x384xf32>
    %4 = arith.truncf %3 : vector<256x384xf32> to vector<256x384xbf16>
    %c0_3 = arith.constant 0 : index
    %c0_4 = arith.constant 0 : index
    %5 = vector.load %arg4[%c0_3, %c0_4] : memref<256x384xbf16, #tpu.memory_space<vmem>>, vector<256x384xbf16>
    tpu.vector_store %arg4[%c0_3, %c0_4], %4 {strides = array<i32>} : memref<256x384xbf16, #tpu.memory_space<vmem>>, vector<256x384xbf16>,
    return
  }
  func.func @transform_0(%arg0: i32, %arg1: i32) -> (i32, i32) {
    %c0_i32 = arith.constant 0 : i32
    %c0_i32_0 = arith.constant 0 : i32
    return %arg1, %c0_i32 : i32, i32
  }
  func.func @transform_1(%arg0: i32, %arg1: i32) -> (i32, i32) {
    %c0_i32 = arith.constant 0 : i32
    %c0_i32_0 = arith.constant 0 : i32
    return %c0_i32, %arg0 : i32, i32
  }
  func.func @transform_2(%arg0: i32, %arg1: i32) -> (i32, i32) {
    %c0_i32 = arith.constant 0 : i32
    return %arg1, %arg0 : i32, i32
  }
}

</mosaic_0001>

<llo_original>
// kernel: tpu_custom_call.1
$region0: #{tpu_custom_call.1}
  #allocation0 [shape = 'u32[]', space=smem, size = 0x4, offset = 0x4, fixed_abs, tag = 'smem constant byte address 0x4 - core index']
  #allocation1 [shape = 'u32[144,128]{1,0:T(1,128)}', space=vmem, size = 0x12000, scoped, tag = 'internal scratch']
  %s0 = inlined_call_operand.hbm [shape: f32[1024,128], index: 0, kind: input, shape index: {}]
  %s1 = inlined_call_operand.hbm [shape: bf16[128,384], index: 1, kind: input, shape index: {}]
  %s2 = inlined_call_operand.hbm [shape: bf16[1024,384], index: 2, kind: output, shape index: {}]
  %s3 = sld [smem:[#allocation0]]
  $region49: #{tpu_custom_call.1} parent=0
    _
  %s5 = ssub.s32 1, %s3
  %s6 = scalar_select 0, %s5, %s3
  $region1: #{tpu_custom_call.1} parent=0
    #allocation2 [shape = 'u8[262144]{0}', space=vmem, size = 0x40000, scoped, tag = 'input window, operand 0']
    #allocation3 [shape = 's32[2]{0}', space=sflag, size = 0x8, scoped, tag = 'scoped memory for tpu_custom_call.1']
    #allocation4 [shape = 's32[2]{0}', space=sflag, size = 0x8, scoped, tag = 'scoped memory for tpu_custom_call.1']
    #allocation5 [shape = 'u8[98304]{0}', space=vmem, size = 0x18000, scoped, tag = 'input window, operand 1, single buffered']
    #allocation6 [shape = 's32[1]{0}', space=sflag, size = 0x4, scoped, tag = 'scoped memory for tpu_custom_call.1']
    #allocation7 [shape = 'u8[393216]{0}', space=vmem, size = 0x60000, scoped, tag = 'output window, operand 0']
    %7 = vsyncpa [#allocation3], 0
    %s8 = scalar_lea.sflag [#allocation3], 1
    %9 = vsyncpa %s8, 0
    %10 = vsyncpa [#allocation6], 0
    %11 = vsyncpa [#allocation4], 0
    %s12 = scalar_lea.sflag [#allocation4], 1
    %13 = vsyncpa %s12, 0
    loop: start=0, step=1, limit=6
    $region2: #{tpu_custom_call.1} parent=1 // loop_pre_header
      _
    $region3: #{tpu_custom_call.1} parent=1 // loop_header
      %s15 = sphi 0, %s19
      %p16 = scmp.ge.s32.totalorder %s15, 6
      %s22 = sphi 0, %s34
      %s23 = sphi 0, %s30
      %s24 = sphi 0, %s22
      %s25 = sphi 0, %s23
      %s26 = sphi 0, %s24
      %s27 = sphi 0, %s25
      %s37 = sphi 0, %s39
      %s40 = sphi 0, %s37
      %s41 = sphi 0, %s40
      %s57 = sphi 0, %s41
      %s63 = sphi 0, %s65
      %s66 = sphi 0, %s63
      %s67 = sphi 0, %s66
      %s83 = sphi 0, %s67
      %s91 = sphi 0, %s93
      %s94 = sphi 0, %s91
      %s95 = sphi 0, %s94
      %s111 = sphi 0, %s95
    $region4: #{tpu_custom_call.1} parent=1 // loop_header_branch
      %18 = sbr.rel (%p16) target = $region8
    $region5: #{tpu_custom_call.1} parent=1 // loop_body
      %s20 = ssub.s32 %s15, 1
      %s21 = ssub.s32 %s15, 2
      %s28 = sadd.s32 1, %s23
      %p29 = scmp.ge.s32.totalorder %s28, 4
      %s30 = scalar_select %p29, 0, %s28
      %s31 = sadd.s32 1, %s22
      %s32 = scalar_select %p29, %s31, %s22
      %p33 = scmp.ge.s32.totalorder %s32, 1
      %s34 = scalar_select %p33, 0, %s32
      %s35 = ssub.s32 %s23, %s30
      %p36 = scmp.eq.s32.totalorder %s35, 0
      %s38 = sadd.s32 %s37, 1
      %s39 = scalar_select %p36, %s37, %s38
      %p42 = pneg %p36
      %p43 = scmp.eq.s32.totalorder %s15, 3
      %p44 = por %p42, %p43
      %p45 = scmp.ne.s32.totalorder %s37, %s40
      %p46 = scmp.eq.s32.totalorder %s15, 0
      %p47 = por %p45, %p46
      %p48 = scmp.ne.s32.totalorder %s37, %s40
      %p49 = scmp.eq.s32.totalorder %s20, 3
      %p50 = por %p48, %p49
      %p51 = scmp.ne.s32.totalorder %s40, %s41
      %p52 = scmp.eq.s32.totalorder %s20, 0
      %p53 = por %p51, %p52
      %p54 = scmp.ne.s32.totalorder %s40, %s41
      %p55 = scmp.eq.s32.totalorder %s21, 3
      %p56 = por %p54, %p55
      %p58 = scmp.ne.s32.totalorder %s41, %s57
      %p59 = scmp.eq.s32.totalorder %s21, 0
      %p60 = por %p58, %p59
      %s61 = ssub.s32 %s22, %s34
      %p62 = scmp.eq.s32.totalorder %s61, 0
      %s64 = sadd.s32 %s63, 1
      %s65 = scalar_select %p62, %s63, %s64
      %p68 = pneg %p62
      %p69 = scmp.eq.s32.totalorder %s15, 3
      %p70 = por %p68, %p69
      %p71 = scmp.ne.s32.totalorder %s63, %s66
      %p72 = scmp.eq.s32.totalorder %s15, 0
      %p73 = por %p71, %p72
      %p74 = scmp.ne.s32.totalorder %s63, %s66
      %p75 = scmp.eq.s32.totalorder %s20, 3
      %p76 = por %p74, %p75
      %p77 = scmp.ne.s32.totalorder %s66, %s67
      %p78 = scmp.eq.s32.totalorder %s20, 0
      %p79 = por %p77, %p78
      %p80 = scmp.ne.s32.totalorder %s66, %s67
      %p81 = scmp.eq.s32.totalorder %s21, 3
      %p82 = por %p80, %p81
      %p84 = scmp.ne.s32.totalorder %s67, %s83
      %p85 = scmp.eq.s32.totalorder %s21, 0
      %p86 = por %p84, %p85
      %s87 = ssub.s32 %s23, %s30
      %s88 = ssub.s32 %s22, %s34
      %s89 = sor.u32 %s87, %s88
      %p90 = scmp.eq.s32.totalorder %s89, 0
      %s92 = sadd.s32 %s91, 1
      %s93 = scalar_select %p90, %s91, %s92
      %p96 = pneg %p90
      %p97 = scmp.eq.s32.totalorder %s15, 3
      %p98 = por %p96, %p97
      %p99 = scmp.ne.s32.totalorder %s91, %s94
      %p100 = scmp.eq.s32.totalorder %s15, 0
      %p101 = por %p99, %p100
      %p102 = scmp.ne.s32.totalorder %s91, %s94
      %p103 = scmp.eq.s32.totalorder %s20, 3
      %p104 = por %p102, %p103
      %p105 = scmp.ne.s32.totalorder %s94, %s95
      %p106 = scmp.eq.s32.totalorder %s20, 0
      %p107 = por %p105, %p106
      %p108 = scmp.ne.s32.totalorder %s94, %s95
      %p109 = scmp.eq.s32.totalorder %s21, 3
      %p110 = por %p108, %p109
      %p112 = scmp.ne.s32.totalorder %s95, %s111
      %p113 = scmp.eq.s32.totalorder %s21, 0
      %p114 = por %p112, %p113
      %p115 = scmp.le.s32.totalorder 1, %s15
      %p116 = scmp.lt.s32.totalorder %s15, 5
      %p117 = pnand %p115, %p116
      %p118 = pneg %p117
      // Predicated region
      $region9: #{tpu_custom_call.1} parent=5 // pred_check
        _
      $region10: #{tpu_custom_call.1} parent=5 // pred_check_branch
        %120 = sbr.rel (%p117) target = $region12
      $region11: #{tpu_custom_call.1} parent=5 // pred_region
        %s121 = ssub.s32 %s15, 1
        // Predicated region
        $region13: #{tpu_custom_call.1} parent=11 // pred_check
          %p122 = pneg %p79
        $region14: #{tpu_custom_call.1} parent=11 // pred_check_branch
          %124 = sbr.rel (%p122) target = $region16
        $region15: #{tpu_custom_call.1} parent=11 // pred_region
          %s125 = smul.u32 3, %s24
          %s127 = ssub.s32 3072, 3072
          %128 = vsyncadd [#allocation6], %s127
          %s129 = smul.addr %s125, 64
          %s130 = scalar_lea.hbm %s1, %s129
          %s131 = sshll.u32 [#allocation5], 4
          %s132 = int_to_ptr.vmem [resolvable:$true] %s131
          %137 = dma.hbm_to_vmem [thread:$0]  %s130, 3072, %s132, [#allocation6], 192, 192, 12
        $region16: #{tpu_custom_call.1} parent=11 // pred_fallthru
          _
      $region12: #{tpu_custom_call.1} parent=5 // pred_fallthru
        _
      %p138 = scmp.lt.s32.totalorder %s15, 4
      // Predicated region
      $region17: #{tpu_custom_call.1} parent=5 // pred_check
        %p139 = pneg %p138
      $region18: #{tpu_custom_call.1} parent=5 // pred_check_branch
        %141 = sbr.rel (%p139) target = $region20
      $region19: #{tpu_custom_call.1} parent=5 // pred_region
        // Predicated region
        $region21: #{tpu_custom_call.1} parent=19 // pred_check
          %p142 = pneg %p47
        $region22: #{tpu_custom_call.1} parent=19 // pred_check_branch
          %144 = sbr.rel (%p142) target = $region24
        $region23: #{tpu_custom_call.1} parent=19 // pred_region
          %s145 = sand.u32 %s37, 1
          %s146 = scalar_lea.sflag [#allocation3], %s145
          %s147 = sand.u32 %s37, 1
          %s148 = smul.addr %s147, 256
          %s149 = scalar_lea.vmem [#allocation2], %s148
          %s150 = smul.u32 32, %s23
          %s152 = ssub.s32 4096, 4096
          %153 = vsyncadd %s146, %s152
          %s154 = smul.addr %s150, 128
          %s155 = scalar_lea.hbm %s0, %s154
          %s156 = sshll.u32 %s149, 4
          %s157 = int_to_ptr.vmem [resolvable:$true] %s156
          %162 = dma.hbm_to_vmem [thread:$0]  %s155, 4096, %s157, %s146, 128, 128, 8
        $region24: #{tpu_custom_call.1} parent=19 // pred_fallthru
          _
      $region20: #{tpu_custom_call.1} parent=5 // pred_fallthru
        _
      %p163 = scmp.le.s32.totalorder 1, %s15
      %p164 = scmp.lt.s32.totalorder %s15, 5
      %p165 = pnand %p163, %p164
      %p166 = pneg %p165
      // Predicated region
      $region25: #{tpu_custom_call.1} parent=5 // pred_check
        _
      $region26: #{tpu_custom_call.1} parent=5 // pred_check_branch
        %168 = sbr.rel (%p165) target = $region28
      $region27: #{tpu_custom_call.1} parent=5 // pred_region
        %s169 = ssub.s32 %s15, 1
        %s170 = sand.u32 %s40, 1
        %s171 = scalar_lea.sflag [#allocation3], %s170
        %s172 = sand.u32 %s40, 1
        %s173 = smul.addr %s172, 256
        %s174 = scalar_lea.vmem [#allocation2], %s173
        // Predicated region
        $region29: #{tpu_custom_call.1} parent=27 // pred_check
          %p175 = pneg %p53
        $region30: #{tpu_custom_call.1} parent=27 // pred_check_branch
          %177 = sbr.rel (%p175) target = $region32
        $region31: #{tpu_custom_call.1} parent=27 // pred_region
          %178 = dma.done %s171, 4096
        $region32: #{tpu_custom_call.1} parent=27 // pred_fallthru
          _
        // Predicated region
        $region33: #{tpu_custom_call.1} parent=27 // pred_check
          %p179 = pneg %p79
        $region34: #{tpu_custom_call.1} parent=27 // pred_check_branch
          %181 = sbr.rel (%p179) target = $region36
        $region35: #{tpu_custom_call.1} parent=27 // pred_region
          %182 = dma.done [#allocation6], 3072
        $region36: #{tpu_custom_call.1} parent=27 // pred_fallthru
          _
        %s183 = sand.u32 %s40, 1
        %s184 = scalar_lea.sflag [#allocation3], %s183
        %s185 = sand.u32 %s40, 1
        %s186 = smul.addr %s185, 256
        %s187 = scalar_lea.vmem [#allocation2], %s186
        %p188 = pneg %p53
        %p189 = pneg %p50
        %p190 = pneg %p79
        %p191 = pneg %p76
        %p192 = pneg %p107
        %p193 = pneg %p104
        %s194 = sand.u32 %s94, 1
        %s195 = scalar_lea.sflag [#allocation4], %s194
        %s196 = sand.u32 %s94, 1
        %s197 = smul.addr %s196, 384
        %s198 = scalar_lea.vmem [#allocation7], %s197
        %s199 = smul.u32 32, %s25
        %s200 = smul.u32 3, %s24
        %s201 = smul.u32 32, %s25
        %s202 = smul.u32 3, %s24
        %v204 = vld [vmem:[%s174] sm:$0xff]
        %v205 = vld [vmem:[%s174 + $0x8] sm:$0xff]
        %v206 = vld [vmem:[%s174 + $0x10] sm:$0xff]
        %v207 = vld [vmem:[%s174 + $0x18] sm:$0xff]
        %v208 = vld [vmem:[%s174 + $0x20] sm:$0xff]
        %v209 = vld [vmem:[%s174 + $0x28] sm:$0xff]
        %v210 = vld [vmem:[%s174 + $0x30] sm:$0xff]
        %v211 = vld [vmem:[%s174 + $0x38] sm:$0xff]
        %v212 = vld [vmem:[%s174 + $0x40] sm:$0xff]
        %v213 = vld [vmem:[%s174 + $0x48] sm:$0xff]
        %v214 = vld [vmem:[%s174 + $0x50] sm:$0xff]
        %v215 = vld [vmem:[%s174 + $0x58] sm:$0xff]
        %v216 = vld [vmem:[%s174 + $0x60] sm:$0xff]
        %v217 = vld [vmem:[%s174 + $0x68] sm:$0xff]
        %v218 = vld [vmem:[%s174 + $0x70] sm:$0xff]
        %v219 = vld [vmem:[%s174 + $0x78] sm:$0xff]
        %v220 = vld [vmem:[%s174 + $0x80] sm:$0xff]
        %v221 = vld [vmem:[%s174 + $0x88] sm:$0xff]
        %v222 = vld [vmem:[%s174 + $0x90] sm:$0xff]
        %v223 = vld [vmem:[%s174 + $0x98] sm:$0xff]
        %v224 = vld [vmem:[%s174 + $0xa0] sm:$0xff]
        %v225 = vld [vmem:[%s174 + $0xa8] sm:$0xff]
        %v226 = vld [vmem:[%s174 + $0xb0] sm:$0xff]
        %v227 = vld [vmem:[%s174 + $0xb8] sm:$0xff]
        %v228 = vld [vmem:[%s174 + $0xc0] sm:$0xff]
        %v229 = vld [vmem:[%s174 + $0xc8] sm:$0xff]
        %v230 = vld [vmem:[%s174 + $0xd0] sm:$0xff]
        %v231 = vld [vmem:[%s174 + $0xd8] sm:$0xff]
        %v232 = vld [vmem:[%s174 + $0xe0] sm:$0xff]
        %v233 = vld [vmem:[%s174 + $0xe8] sm:$0xff]
        %v234 = vld [vmem:[%s174 + $0xf0] sm:$0xff]
        %v235 = vld [vmem:[%s174 + $0xf8] sm:$0xff]
        %v236 = vpack.c.bf16 %v205, %v204
        %v237 = vpack.c.bf16 %v207, %v206
        %v238 = vpack.c.bf16 %v209, %v208
        %v239 = vpack.c.bf16 %v211, %v210
        %v240 = vpack.c.bf16 %v213, %v212
        %v241 = vpack.c.bf16 %v215, %v214
        %v242 = vpack.c.bf16 %v217, %v216
        %v243 = vpack.c.bf16 %v219, %v218
        %v244 = vpack.c.bf16 %v221, %v220
        %v245 = vpack.c.bf16 %v223, %v222
        %v246 = vpack.c.bf16 %v225, %v224
        %v247 = vpack.c.bf16 %v227, %v226
        %v248 = vpack.c.bf16 %v229, %v228
        %v249 = vpack.c.bf16 %v231, %v230
        %v250 = vpack.c.bf16 %v233, %v232
        %v251 = vpack.c.bf16 %v235, %v234
        %v252 = vld [vmem:[#allocation5] sm:$0xff]
        %v253 = vld [vmem:[#allocation5 + $0x8] sm:$0xf]
        %v254 = vld [vmem:[#allocation5 + $0xc] sm:$0xff]
        %v255 = vld [vmem:[#allocation5 + $0x14] sm:$0xf]
        %v256 = vld [vmem:[#allocation5 + $0x18] sm:$0xff]
        %v257 = vld [vmem:[#allocation5 + $0x20] sm:$0xf]
        %v258 = vld [vmem:[#allocation5 + $0x24] sm:$0xff]
        %v259 = vld [vmem:[#allocation5 + $0x2c] sm:$0xf]
        %v260 = vld [vmem:[#allocation5 + $0x30] sm:$0xff]
        %v261 = vld [vmem:[#allocation5 + $0x38] sm:$0xf]
        %v262 = vld [vmem:[#allocation5 + $0x3c] sm:$0xff]
        %v263 = vld [vmem:[#allocation5 + $0x44] sm:$0xf]
        %v264 = vld [vmem:[#allocation5 + $0x48] sm:$0xff]
        %v265 = vld [vmem:[#allocation5 + $0x50] sm:$0xf]
        %v266 = vld [vmem:[#allocation5 + $0x54] sm:$0xff]
        %v267 = vld [vmem:[#allocation5 + $0x5c] sm:$0xf]
        %v268 = vld [vmem:[#allocation5 + $0x60] sm:$0xff]
        %v269 = vld [vmem:[#allocation5 + $0x68] sm:$0xf]
        %v270 = vld [vmem:[#allocation5 + $0x6c] sm:$0xff]
        %v271 = vld [vmem:[#allocation5 + $0x74] sm:$0xf]
        %v272 = vld [vmem:[#allocation5 + $0x78] sm:$0xff]
        %v273 = vld [vmem:[#allocation5 + $0x80] sm:$0xf]
        %v274 = vld [vmem:[#allocation5 + $0x84] sm:$0xff]
        %v275 = vld [vmem:[#allocation5 + $0x8c] sm:$0xf]
        %v276 = vld [vmem:[#allocation5 + $0x90] sm:$0xff]
        %v277 = vld [vmem:[#allocation5 + $0x98] sm:$0xf]
        %v278 = vld [vmem:[#allocation5 + $0x9c] sm:$0xff]
        %v279 = vld [vmem:[#allocation5 + $0xa4] sm:$0xf]
        %v280 = vld [vmem:[#allocation5 + $0xa8] sm:$0xff]
        %v281 = vld [vmem:[#allocation5 + $0xb0] sm:$0xf]
        %v282 = vld [vmem:[#allocation5 + $0xb4] sm:$0xff]
        %v283 = vld [vmem:[#allocation5 + $0xbc] sm:$0xf]
        %v316 = vunpack.c.l.b16 %v252
        %v317 = vunpack.c.h.b16 %v252
        %v318 = vunpack.c.l.b16 %v253
        %v319 = vunpack.c.l.b16 %v254
        %v320 = vunpack.c.h.b16 %v254
        %v321 = vunpack.c.l.b16 %v255
        %v322 = vunpack.c.l.b16 %v256
        %v323 = vunpack.c.h.b16 %v256
        %v324 = vunpack.c.l.b16 %v257
        %v325 = vunpack.c.l.b16 %v258
        %v326 = vunpack.c.h.b16 %v258
        %v327 = vunpack.c.l.b16 %v259
        %v328 = vunpack.c.l.b16 %v260
        %v329 = vunpack.c.h.b16 %v260
        %v330 = vunpack.c.l.b16 %v261
        %v331 = vunpack.c.l.b16 %v262
        %v332 = vunpack.c.h.b16 %v262
        %v333 = vunpack.c.l.b16 %v263
        %v334 = vunpack.c.l.b16 %v264
        %v335 = vunpack.c.h.b16 %v264
        %v336 = vunpack.c.l.b16 %v265
        %v337 = vunpack.c.l.b16 %v266
        %v338 = vunpack.c.h.b16 %v266
        %v339 = vunpack.c.l.b16 %v267
        %v340 = vunpack.c.l.b16 %v268
        %v341 = vunpack.c.h.b16 %v268
        %v342 = vunpack.c.l.b16 %v269
        %v343 = vunpack.c.l.b16 %v270
        %v344 = vunpack.c.h.b16 %v270
        %v345 = vunpack.c.l.b16 %v271
        %v346 = vunpack.c.l.b16 %v272
        %v347 = vunpack.c.h.b16 %v272
        %v348 = vunpack.c.l.b16 %v273
        %v349 = vunpack.c.l.b16 %v274
        %v350 = vunpack.c.h.b16 %v274
        %v351 = vunpack.c.l.b16 %v275
        %v352 = vunpack.c.l.b16 %v276
        %v353 = vunpack.c.h.b16 %v276
        %v354 = vunpack.c.l.b16 %v277
        %v355 = vunpack.c.l.b16 %v278
        %v356 = vunpack.c.h.b16 %v278
        %v357 = vunpack.c.l.b16 %v279
        %v358 = vunpack.c.l.b16 %v280
        %v359 = vunpack.c.h.b16 %v280
        %v360 = vunpack.c.l.b16 %v281
        %v361 = vunpack.c.l.b16 %v282
        %v362 = vunpack.c.h.b16 %v282
        %v363 = vunpack.c.l.b16 %v283
        %v364 = vpack.c.b16 %v319, %v316
        %v365 = vpack.c.b16 %v320, %v317
        %v366 = vpack.c.b16 %v321, %v318
        %v367 = vpack.c.b16 %v325, %v322
        %v368 = vpack.c.b16 %v326, %v323
        %v369 = vpack.c.b16 %v327, %v324
        %v370 = vpack.c.b16 %v331, %v328
        %v371 = vpack.c.b16 %v332, %v329
        %v372 = vpack.c.b16 %v333, %v330
        %v373 = vpack.c.b16 %v337, %v334
        %v374 = vpack.c.b16 %v338, %v335
        %v375 = vpack.c.b16 %v339, %v336
        %v376 = vpack.c.b16 %v343, %v340
        %v377 = vpack.c.b16 %v344, %v341
        %v378 = vpack.c.b16 %v345, %v342
        %v379 = vpack.c.b16 %v349, %v346
        %v380 = vpack.c.b16 %v350, %v347
        %v381 = vpack.c.b16 %v351, %v348
        %v382 = vpack.c.b16 %v355, %v352
        %v383 = vpack.c.b16 %v356, %v353
        %v384 = vpack.c.b16 %v357, %v354
        %v385 = vpack.c.b16 %v361, %v358
        %v386 = vpack.c.b16 %v362, %v359
        %v387 = vpack.c.b16 %v363, %v360
        %412 = vmatprep.subr.bf16.mxu0 %v365
        %413 = vmatpush1.bf16.msra.mxu0 %v364
        %414 = vmatprep.subr.bf16.mxu0 %v368
        %415 = vmatpush1.bf16.msra.mxu0 %v367
        %416 = vmatprep.subr.bf16.mxu0 %v371
        %417 = vmatpush1.bf16.msra.mxu0 %v370
        %418 = vmatprep.subr.bf16.mxu0 %v374
        %419 = vmatpush1.bf16.msra.mxu0 %v373
        %420 = vmatprep.subr.bf16.mxu0 %v377
        %421 = vmatpush1.bf16.msra.mxu0 %v376
        %422 = vmatprep.subr.bf16.mxu0 %v380
        %423 = vmatpush1.bf16.msra.mxu0 %v379
        %424 = vmatprep.subr.bf16.mxu0 %v383
        %425 = vmatpush1.bf16.msra.mxu0 %v382
        %426 = vmatprep.subr.bf16.mxu0 %v386
        %427 = vmatpush1.bf16.msra.mxu0 %v385
        %428 = vmatprep.subr.bf16.mxu0 0
        %429 = vmatpush1.bf16.msra.mxu0 0
        %430 = vmatprep.subr.bf16.mxu0 0
        %431 = vmatpush1.bf16.msra.mxu0 0
        %432 = vmatprep.subr.bf16.mxu0 0
        %433 = vmatpush1.bf16.msra.mxu0 0
        %434 = vmatprep.subr.bf16.mxu0 0
        %435 = vmatpush1.bf16.msra.mxu0 0
        %436 = vmatprep.subr.bf16.mxu0 0
        %437 = vmatpush1.bf16.msra.mxu0 0
        %438 = vmatprep.subr.bf16.mxu0 0
        %439 = vmatpush1.bf16.msra.mxu0 0
        %440 = vmatprep.subr.bf16.mxu0 0
        %441 = vmatpush1.bf16.msra.mxu0 0
        %442 = vmatprep.subr.bf16.mxu0 0
        %443 = vmatpush1.bf16.msra.mxu0 0
        %444 = vmatprep.mubr.bf16.mxu0 0
        %445 = vmatmul.mubr.bf16.gmra.mrb[0].mxu0 %v236
        %v446 = vpop.f32.mrb[0].mxu0
        %v447 = vadd.f32 0.0, %v446
        %v448 = vpop.f32.mrb[0].mxu0
        %v449 = vadd.f32 0.0, %v448
        %v450 = vpop.f32.mrb[0].mxu0
        %v451 = vadd.f32 0.0, %v450
        %v452 = vpop.f32.mrb[0].mxu0
        %v453 = vadd.f32 0.0, %v452
        %454 = vmatprep.mubr.bf16.mxu0 0
        %455 = vmatmul.mubr.bf16.gmra.mrb[0].mxu0 %v237
        %v456 = vpop.f32.mrb[0].mxu0
        %v457 = vadd.f32 0.0, %v456
        %v458 = vpop.f32.mrb[0].mxu0
        %v459 = vadd.f32 0.0, %v458
        %v460 = vpop.f32.mrb[0].mxu0
        %v461 = vadd.f32 0.0, %v460
        %v462 = vpop.f32.mrb[0].mxu0
        %v463 = vadd.f32 0.0, %v462
        %464 = vmatprep.mubr.bf16.mxu0 0
        %465 = vmatmul.mubr.bf16.gmra.mrb[0].mxu0 %v238
        %v466 = vpop.f32.mrb[0].mxu0
        %v467 = vadd.f32 0.0, %v466
        %v468 = vpop.f32.mrb[0].mxu0
        %v469 = vadd.f32 0.0, %v468
        %v470 = vpop.f32.mrb[0].mxu0
        %v471 = vadd.f32 0.0, %v470
        %v472 = vpop.f32.mrb[0].mxu0
        %v473 = vadd.f32 0.0, %v472
        %474 = vmatprep.mubr.bf16.mxu0 0
        %475 = vmatmul.mubr.bf16.gmra.mrb[0].mxu0 %v239
        %v476 = vpop.f32.mrb[0].mxu0
        %v477 = vadd.f32 0.0, %v476
        %v478 = vpop.f32.mrb[0].mxu0
        %v479 = vadd.f32 0.0, %v478
        %v480 = vpop.f32.mrb[0].mxu0
        %v481 = vadd.f32 0.0, %v480
        %v482 = vpop.f32.mrb[0].mxu0
        %v483 = vadd.f32 0.0, %v482
        %484 = vmatprep.mubr.bf16.mxu0 0
        %485 = vmatmul.mubr.bf16.gmra.mrb[0].mxu0 %v240
        %v486 = vpop.f32.mrb[0].mxu0
        %v487 = vadd.f32 0.0, %v486
        %v488 = vpop.f32.mrb[0].mxu0
        %v489 = vadd.f32 0.0, %v488
        %v490 = vpop.f32.mrb[0].mxu0
        %v491 = vadd.f32 0.0, %v490
        %v492 = vpop.f32.mrb[0].mxu0
        %v493 = vadd.f32 0.0, %v492
        %494 = vmatprep.mubr.bf16.mxu0 0
        %495 = vmatmul.mubr.bf16.gmra.mrb[0].mxu0 %v241
        %v496 = vpop.f32.mrb[0].mxu0
        %v497 = vadd.f32 0.0, %v496
        %v498 = vpop.f32.mrb[0].mxu0
        %v499 = vadd.f32 0.0, %v498
        %v500 = vpop.f32.mrb[0].mxu0
        %v501 = vadd.f32 0.0, %v500
        %v502 = vpop.f32.mrb[0].mxu0
        %v503 = vadd.f32 0.0, %v502
        %504 = vmatprep.mubr.bf16.mxu0 0
        %505 = vmatmul.mubr.bf16.gmra.mrb[0].mxu0 %v242
        %v506 = vpop.f32.mrb[0].mxu0
        %v507 = vadd.f32 0.0, %v506
        %v508 = vpop.f32.mrb[0].mxu0
        %v509 = vadd.f32 0.0, %v508
        %v510 = vpop.f32.mrb[0].mxu0
        %v511 = vadd.f32 0.0, %v510
        %v512 = vpop.f32.mrb[0].mxu0
        %v513 = vadd.f32 0.0, %v512
        %514 = vmatprep.mubr.bf16.mxu0 0
        %515 = vmatmul.mubr.bf16.gmra.mrb[0].mxu0 %v243
        %v516 = vpop.f32.mrb[0].mxu0
        %v517 = vadd.f32 0.0, %v516
        %v518 = vpop.f32.mrb[0].mxu0
        %v519 = vadd.f32 0.0, %v518
        %v520 = vpop.f32.mrb[0].mxu0
        %v521 = vadd.f32 0.0, %v520
        %v522 = vpop.f32.mrb[0].mxu0
        %v523 = vadd.f32 0.0, %v522
        %524 = vmatprep.mubr.bf16.mxu0 0
        %525 = vmatmul.mubr.bf16.gmra.mrb[0].mxu0 %v244
        %v526 = vpop.f32.mrb[0].mxu0
        %v527 = vadd.f32 0.0, %v526
        %v528 = vpop.f32.mrb[0].mxu0
        %v529 = vadd.f32 0.0, %v528
        %v530 = vpop.f32.mrb[0].mxu0
        %v531 = vadd.f32 0.0, %v530
        %v532 = vpop.f32.mrb[0].mxu0
        %v533 = vadd.f32 0.0, %v532
        %534 = vmatprep.mubr.bf16.mxu0 0
        %535 = vmatmul.mubr.bf16.gmra.mrb[0].mxu0 %v245
        %v536 = vpop.f32.mrb[0].mxu0
        %v537 = vadd.f32 0.0, %v536
        %v538 = vpop.f32.mrb[0].mxu0
        %v539 = vadd.f32 0.0, %v538
        %v540 = vpop.f32.mrb[0].mxu0
        %v541 = vadd.f32 0.0, %v540
        %v542 = vpop.f32.mrb[0].mxu0
        %v543 = vadd.f32 0.0, %v542
        %544 = vmatprep.mubr.bf16.mxu0 0
        %545 = vmatmul.mubr.bf16.gmra.mrb[0].mxu0 %v246
        %v546 = vpop.f32.mrb[0].mxu0
        %v547 = vadd.f32 0.0, %v546
        %v548 = vpop.f32.mrb[0].mxu0
        %v549 = vadd.f32 0.0, %v548
        %v550 = vpop.f32.mrb[0].mxu0
        %v551 = vadd.f32 0.0, %v550
        %v552 = vpop.f32.mrb[0].mxu0
        %v553 = vadd.f32 0.0, %v552
        %554 = vmatprep.mubr.bf16.mxu0 0
        %555 = vmatmul.mubr.bf16.gmra.mrb[0].mxu0 %v247
        %v556 = vpop.f32.mrb[0].mxu0
        %v557 = vadd.f32 0.0, %v556
        %v558 = vpop.f32.mrb[0].mxu0
        %v559 = vadd.f32 0.0, %v558
        %v560 = vpop.f32.mrb[0].mxu0
        %v561 = vadd.f32 0.0, %v560
        %v562 = vpop.f32.mrb[0].mxu0
        %v563 = vadd.f32 0.0, %v562
        %564 = vmatprep.mubr.bf16.mxu0 0
        %565 = vmatmul.mubr.bf16.gmra.mrb[0].mxu0 %v248
        %v566 = vpop.f32.mrb[0].mxu0
        %v567 = vadd.f32 0.0, %v566
        %v568 = vpop.f32.mrb[0].mxu0
        %v569 = vadd.f32 0.0, %v568
        %v570 = vpop.f32.mrb[0].mxu0
        %v571 = vadd.f32 0.0, %v570
        %v572 = vpop.f32.mrb[0].mxu0
        %v573 = vadd.f32 0.0, %v572
        %574 = vmatprep.mubr.bf16.mxu0 0
        %575 = vmatmul.mubr.bf16.gmra.mrb[0].mxu0 %v249
        %v576 = vpop.f32.mrb[0].mxu0
        %v577 = vadd.f32 0.0, %v576
        %v578 = vpop.f32.mrb[0].mxu0
        %v579 = vadd.f32 0.0, %v578
        %v580 = vpop.f32.mrb[0].mxu0
        %v581 = vadd.f32 0.0, %v580
        %v582 = vpop.f32.mrb[0].mxu0
        %v583 = vadd.f32 0.0, %v582
        %584 = vmatprep.mubr.bf16.mxu0 0
        %585 = vmatmul.mubr.bf16.gmra.mrb[0].mxu0 %v250
        %v586 = vpop.f32.mrb[0].mxu0
        %v587 = vadd.f32 0.0, %v586
        %v588 = vpop.f32.mrb[0].mxu0
        %v589 = vadd.f32 0.0, %v588
        %v590 = vpop.f32.mrb[0].mxu0
        %v591 = vadd.f32 0.0, %v590
        %v592 = vpop.f32.mrb[0].mxu0
        %v593 = vadd.f32 0.0, %v592
        %594 = vmatprep.mubr.bf16.mxu0 0
        %595 = vmatmul.mubr.bf16.gmra.mrb[0].mxu0 %v251
        %v596 = vpop.f32.mrb[0].mxu0
        %v597 = vadd.f32 0.0, %v596
        %v598 = vpop.f32.mrb[0].mxu0
        %v599 = vadd.f32 0.0, %v598
        %v600 = vpop.f32.mrb[0].mxu0
        %v601 = vadd.f32 0.0, %v600
        %v602 = vpop.f32.mrb[0].mxu0
        %v603 = vadd.f32 0.0, %v602
        %604 = vdwg.mxu0
        %605 = vmatprep.subr.bf16.mxu0 0
        %606 = vmatpush1.bf16.msra.mxu0 %v366
        %607 = vmatprep.subr.bf16.mxu0 0
        %608 = vmatpush1.bf16.msra.mxu0 %v369
        %609 = vmatprep.subr.bf16.mxu0 0
        %610 = vmatpush1.bf16.msra.mxu0 %v372
        %611 = vmatprep.subr.bf16.mxu0 0
        %612 = vmatpush1.bf16.msra.mxu0 %v375
        %613 = vmatprep.subr.bf16.mxu0 0
        %614 = vmatpush1.bf16.msra.mxu0 %v378
        %615 = vmatprep.subr.bf16.mxu0 0
        %616 = vmatpush1.bf16.msra.mxu0 %v381
        %617 = vmatprep.subr.bf16.mxu0 0
        %618 = vmatpush1.bf16.msra.mxu0 %v384
        %619 = vmatprep.subr.bf16.mxu0 0
        %620 = vmatpush1.bf16.msra.mxu0 %v387
        %621 = vmatprep.subr.bf16.mxu0 0
        %622 = vmatpush1.bf16.msra.mxu0 0
        %623 = vmatprep.subr.bf16.mxu0 0
        %624 = vmatpush1.bf16.msra.mxu0 0
        %625 = vmatprep.subr.bf16.mxu0 0
        %626 = vmatpush1.bf16.msra.mxu0 0
        %627 = vmatprep.subr.bf16.mxu0 0
        %628 = vmatpush1.bf16.msra.mxu0 0
        %629 = vmatprep.subr.bf16.mxu0 0
        %630 = vmatpush1.bf16.msra.mxu0 0
        %631 = vmatprep.subr.bf16.mxu0 0
        %632 = vmatpush1.bf16.msra.mxu0 0
        %633 = vmatprep.subr.bf16.mxu0 0
        %634 = vmatpush1.bf16.msra.mxu0 0
        %635 = vmatprep.subr.bf16.mxu0 0
        %636 = vmatpush1.bf16.msra.mxu0 0
        %637 = vmatprep.mubr.bf16.mxu0 0
        %638 = vmatmul.mubr.bf16.gmra.mrb[0].mxu0 %v236
        %v639 = vpop.f32.mrb[0].mxu0
        %v640 = vadd.f32 0.0, %v639
        %v641 = vpop.f32.mrb[0].mxu0
        %v642 = vpop.f32.mrb[0].mxu0
        %v643 = vadd.f32 0.0, %v642
        %v644 = vpop.f32.mrb[0].mxu0
        %645 = vmatprep.mubr.bf16.mxu0 0
        %646 = vmatmul.mubr.bf16.gmra.mrb[0].mxu0 %v237
        %v647 = vpop.f32.mrb[0].mxu0
        %v648 = vadd.f32 0.0, %v647
        %v649 = vpop.f32.mrb[0].mxu0
        %v650 = vpop.f32.mrb[0].mxu0
        %v651 = vadd.f32 0.0, %v650
        %v652 = vpop.f32.mrb[0].mxu0
        %653 = vmatprep.mubr.bf16.mxu0 0
        %654 = vmatmul.mubr.bf16.gmra.mrb[0].mxu0 %v238
        %v655 = vpop.f32.mrb[0].mxu0
        %v656 = vadd.f32 0.0, %v655
        %v657 = vpop.f32.mrb[0].mxu0
        %v658 = vpop.f32.mrb[0].mxu0
        %v659 = vadd.f32 0.0, %v658
        %v660 = vpop.f32.mrb[0].mxu0
        %661 = vmatprep.mubr.bf16.mxu0 0
        %662 = vmatmul.mubr.bf16.gmra.mrb[0].mxu0 %v239
        %v663 = vpop.f32.mrb[0].mxu0
        %v664 = vadd.f32 0.0, %v663
        %v665 = vpop.f32.mrb[0].mxu0
        %v666 = vpop.f32.mrb[0].mxu0
        %v667 = vadd.f32 0.0, %v666
        %v668 = vpop.f32.mrb[0].mxu0
        %669 = vmatprep.mubr.bf16.mxu0 0
        %670 = vmatmul.mubr.bf16.gmra.mrb[0].mxu0 %v240
        %v671 = vpop.f32.mrb[0].mxu0
        %v672 = vadd.f32 0.0, %v671
        %v673 = vpop.f32.mrb[0].mxu0
        %v674 = vpop.f32.mrb[0].mxu0
        %v675 = vadd.f32 0.0, %v674
        %v676 = vpop.f32.mrb[0].mxu0
        %677 = vmatprep.mubr.bf16.mxu0 0
        %678 = vmatmul.mubr.bf16.gmra.mrb[0].mxu0 %v241
        %v679 = vpop.f32.mrb[0].mxu0
        %v680 = vadd.f32 0.0, %v679
        %v681 = vpop.f32.mrb[0].mxu0
        %v682 = vpop.f32.mrb[0].mxu0
        %v683 = vadd.f32 0.0, %v682
        %v684 = vpop.f32.mrb[0].mxu0
        %685 = vmatprep.mubr.bf16.mxu0 0
        %686 = vmatmul.mubr.bf16.gmra.mrb[0].mxu0 %v242
        %v687 = vpop.f32.mrb[0].mxu0
        %v688 = vadd.f32 0.0, %v687
        %v689 = vpop.f32.mrb[0].mxu0
        %v690 = vpop.f32.mrb[0].mxu0
        %v691 = vadd.f32 0.0, %v690
        %v692 = vpop.f32.mrb[0].mxu0
        %693 = vmatprep.mubr.bf16.mxu0 0
        %694 = vmatmul.mubr.bf16.gmra.mrb[0].mxu0 %v243
        %v695 = vpop.f32.mrb[0].mxu0
        %v696 = vadd.f32 0.0, %v695
        %v697 = vpop.f32.mrb[0].mxu0
        %v698 = vpop.f32.mrb[0].mxu0
        %v699 = vadd.f32 0.0, %v698
        %v700 = vpop.f32.mrb[0].mxu0
        %701 = vmatprep.mubr.bf16.mxu0 0
        %702 = vmatmul.mubr.bf16.gmra.mrb[0].mxu0 %v244
        %v703 = vpop.f32.mrb[0].mxu0
        %v704 = vadd.f32 0.0, %v703
        %v705 = vpop.f32.mrb[0].mxu0
        %v706 = vpop.f32.mrb[0].mxu0
        %v707 = vadd.f32 0.0, %v706
        %v708 = vpop.f32.mrb[0].mxu0
        %709 = vmatprep.mubr.bf16.mxu0 0
        %710 = vmatmul.mubr.bf16.gmra.mrb[0].mxu0 %v245
        %v711 = vpop.f32.mrb[0].mxu0
        %v712 = vadd.f32 0.0, %v711
        %v713 = vpop.f32.mrb[0].mxu0
        %v714 = vpop.f32.mrb[0].mxu0
        %v715 = vadd.f32 0.0, %v714
        %v716 = vpop.f32.mrb[0].mxu0
        %717 = vmatprep.mubr.bf16.mxu0 0
        %718 = vmatmul.mubr.bf16.gmra.mrb[0].mxu0 %v246
        %v719 = vpop.f32.mrb[0].mxu0
        %v720 = vadd.f32 0.0, %v719
        %v721 = vpop.f32.mrb[0].mxu0
        %v722 = vpop.f32.mrb[0].mxu0
        %v723 = vadd.f32 0.0, %v722
        %v724 = vpop.f32.mrb[0].mxu0
        %725 = vmatprep.mubr.bf16.mxu0 0
        %726 = vmatmul.mubr.bf16.gmra.mrb[0].mxu0 %v247
        %v727 = vpop.f32.mrb[0].mxu0
        %v728 = vadd.f32 0.0, %v727
        %v729 = vpop.f32.mrb[0].mxu0
        %v730 = vpop.f32.mrb[0].mxu0
        %v731 = vadd.f32 0.0, %v730
        %v732 = vpop.f32.mrb[0].mxu0
        %733 = vmatprep.mubr.bf16.mxu0 0
        %734 = vmatmul.mubr.bf16.gmra.mrb[0].mxu0 %v248
        %v735 = vpop.f32.mrb[0].mxu0
        %v736 = vadd.f32 0.0, %v735
        %v737 = vpop.f32.mrb[0].mxu0
        %v738 = vpop.f32.mrb[0].mxu0
        %v739 = vadd.f32 0.0, %v738
        %v740 = vpop.f32.mrb[0].mxu0
        %741 = vmatprep.mubr.bf16.mxu0 0
        %742 = vmatmul.mubr.bf16.gmra.mrb[0].mxu0 %v249
        %v743 = vpop.f32.mrb[0].mxu0
        %v744 = vadd.f32 0.0, %v743
        %v745 = vpop.f32.mrb[0].mxu0
        %v746 = vpop.f32.mrb[0].mxu0
        %v747 = vadd.f32 0.0, %v746
        %v748 = vpop.f32.mrb[0].mxu0
        %749 = vmatprep.mubr.bf16.mxu0 0
        %750 = vmatmul.mubr.bf16.gmra.mrb[0].mxu0 %v250
        %v751 = vpop.f32.mrb[0].mxu0
        %v752 = vadd.f32 0.0, %v751
        %v753 = vpop.f32.mrb[0].mxu0
        %v754 = vpop.f32.mrb[0].mxu0
        %v755 = vadd.f32 0.0, %v754
        %v756 = vpop.f32.mrb[0].mxu0
        %757 = vmatprep.mubr.bf16.mxu0 0
        %758 = vmatmul.mubr.bf16.gmra.mrb[0].mxu0 %v251
        %v759 = vpop.f32.mrb[0].mxu0
        %v760 = vadd.f32 0.0, %v759
        %v761 = vpop.f32.mrb[0].mxu0
        %v762 = vpop.f32.mrb[0].mxu0
        %v763 = vadd.f32 0.0, %v762
        %v764 = vpop.f32.mrb[0].mxu0
        %765 = vdwg.mxu0
        %v766 = vpack.c.bf16 %v451, %v447
        %v767 = vpack.c.bf16 %v453, %v449
        %v768 = vpack.c.bf16 %v643, %v640
        %v769 = vpack.c.bf16 %v461, %v457
        %v770 = vpack.c.bf16 %v463, %v459
        %v771 = vpack.c.bf16 %v651, %v648
        %v772 = vpack.c.bf16 %v471, %v467
        %v773 = vpack.c.bf16 %v473, %v469
        %v774 = vpack.c.bf16 %v659, %v656
        %v775 = vpack.c.bf16 %v481, %v477
        %v776 = vpack.c.bf16 %v483, %v479
        %v777 = vpack.c.bf16 %v667, %v664
        %v778 = vpack.c.bf16 %v491, %v487
        %v779 = vpack.c.bf16 %v493, %v489
        %v780 = vpack.c.bf16 %v675, %v672
        %v781 = vpack.c.bf16 %v501, %v497
        %v782 = vpack.c.bf16 %v503, %v499
        %v783 = vpack.c.bf16 %v683, %v680
        %v784 = vpack.c.bf16 %v511, %v507
        %v785 = vpack.c.bf16 %v513, %v509
        %v786 = vpack.c.bf16 %v691, %v688
        %v787 = vpack.c.bf16 %v521, %v517
        %v788 = vpack.c.bf16 %v523, %v519
        %v789 = vpack.c.bf16 %v699, %v696
        %v790 = vpack.c.bf16 %v531, %v527
        %v791 = vpack.c.bf16 %v533, %v529
        %v792 = vpack.c.bf16 %v707, %v704
        %v793 = vpack.c.bf16 %v541, %v537
        %v794 = vpack.c.bf16 %v543, %v539
        %v795 = vpack.c.bf16 %v715, %v712
        %v796 = vpack.c.bf16 %v551, %v547
        %v797 = vpack.c.bf16 %v553, %v549
        %v798 = vpack.c.bf16 %v723, %v720
        %v799 = vpack.c.bf16 %v561, %v557
        %v800 = vpack.c.bf16 %v563, %v559
        %v801 = vpack.c.bf16 %v731, %v728
        %v802 = vpack.c.bf16 %v571, %v567
        %v803 = vpack.c.bf16 %v573, %v569
        %v804 = vpack.c.bf16 %v739, %v736
        %v805 = vpack.c.bf16 %v581, %v577
        %v806 = vpack.c.bf16 %v583, %v579
        %v807 = vpack.c.bf16 %v747, %v744
        %v808 = vpack.c.bf16 %v591, %v587
        %v809 = vpack.c.bf16 %v593, %v589
        %v810 = vpack.c.bf16 %v755, %v752
        %v811 = vpack.c.bf16 %v601, %v597
        %v812 = vpack.c.bf16 %v603, %v599
        %v813 = vpack.c.bf16 %v763, %v760
        %v862 = vunpack.c.l.b16 %v766
        %v863 = vunpack.c.l.b16 %v767
        %v864 = vunpack.c.l.b16 %v768
        %v865 = vunpack.c.h.b16 %v766
        %v866 = vunpack.c.h.b16 %v767
        %v867 = vunpack.c.h.b16 %v768
        %v868 = vunpack.c.l.b16 %v769
        %v869 = vunpack.c.l.b16 %v770
        %v870 = vunpack.c.l.b16 %v771
        %v871 = vunpack.c.h.b16 %v769
        %v872 = vunpack.c.h.b16 %v770
        %v873 = vunpack.c.h.b16 %v771
        %v874 = vunpack.c.l.b16 %v772
        %v875 = vunpack.c.l.b16 %v773
        %v876 = vunpack.c.l.b16 %v774
        %v877 = vunpack.c.h.b16 %v772
        %v878 = vunpack.c.h.b16 %v773
        %v879 = vunpack.c.h.b16 %v774
        %v880 = vunpack.c.l.b16 %v775
        %v881 = vunpack.c.l.b16 %v776
        %v882 = vunpack.c.l.b16 %v777
        %v883 = vunpack.c.h.b16 %v775
        %v884 = vunpack.c.h.b16 %v776
        %v885 = vunpack.c.h.b16 %v777
        %v886 = vunpack.c.l.b16 %v778
        %v887 = vunpack.c.l.b16 %v779
        %v888 = vunpack.c.l.b16 %v780
        %v889 = vunpack.c.h.b16 %v778
        %v890 = vunpack.c.h.b16 %v779
        %v891 = vunpack.c.h.b16 %v780
        %v892 = vunpack.c.l.b16 %v781
        %v893 = vunpack.c.l.b16 %v782
        %v894 = vunpack.c.l.b16 %v783
        %v895 = vunpack.c.h.b16 %v781
        %v896 = vunpack.c.h.b16 %v782
        %v897 = vunpack.c.h.b16 %v783
        %v898 = vunpack.c.l.b16 %v784
        %v899 = vunpack.c.l.b16 %v785
        %v900 = vunpack.c.l.b16 %v786
        %v901 = vunpack.c.h.b16 %v784
        %v902 = vunpack.c.h.b16 %v785
        %v903 = vunpack.c.h.b16 %v786
        %v904 = vunpack.c.l.b16 %v787
        %v905 = vunpack.c.l.b16 %v788
        %v906 = vunpack.c.l.b16 %v789
        %v907 = vunpack.c.h.b16 %v787
        %v908 = vunpack.c.h.b16 %v788
        %v909 = vunpack.c.h.b16 %v789
        %v910 = vunpack.c.l.b16 %v790
        %v911 = vunpack.c.l.b16 %v791
        %v912 = vunpack.c.l.b16 %v792
        %v913 = vunpack.c.h.b16 %v790
        %v914 = vunpack.c.h.b16 %v791
        %v915 = vunpack.c.h.b16 %v792
        %v916 = vunpack.c.l.b16 %v793
        %v917 = vunpack.c.l.b16 %v794
        %v918 = vunpack.c.l.b16 %v795
        %v919 = vunpack.c.h.b16 %v793
        %v920 = vunpack.c.h.b16 %v794
        %v921 = vunpack.c.h.b16 %v795
        %v922 = vunpack.c.l.b16 %v796
        %v923 = vunpack.c.l.b16 %v797
        %v924 = vunpack.c.l.b16 %v798
        %v925 = vunpack.c.h.b16 %v796
        %v926 = vunpack.c.h.b16 %v797
        %v927 = vunpack.c.h.b16 %v798
        %v928 = vunpack.c.l.b16 %v799
        %v929 = vunpack.c.l.b16 %v800
        %v930 = vunpack.c.l.b16 %v801
        %v931 = vunpack.c.h.b16 %v799
        %v932 = vunpack.c.h.b16 %v800
        %v933 = vunpack.c.h.b16 %v801
        %v934 = vunpack.c.l.b16 %v802
        %v935 = vunpack.c.l.b16 %v803
        %v936 = vunpack.c.l.b16 %v804
        %v937 = vunpack.c.h.b16 %v802
        %v938 = vunpack.c.h.b16 %v803
        %v939 = vunpack.c.h.b16 %v804
        %v940 = vunpack.c.l.b16 %v805
        %v941 = vunpack.c.l.b16 %v806
        %v942 = vunpack.c.l.b16 %v807
        %v943 = vunpack.c.h.b16 %v805
        %v944 = vunpack.c.h.b16 %v806
        %v945 = vunpack.c.h.b16 %v807
        %v946 = vunpack.c.l.b16 %v808
        %v947 = vunpack.c.l.b16 %v809
        %v948 = vunpack.c.l.b16 %v810
        %v949 = vunpack.c.h.b16 %v808
        %v950 = vunpack.c.h.b16 %v809
        %v951 = vunpack.c.h.b16 %v810
        %v952 = vunpack.c.l.b16 %v811
        %v953 = vunpack.c.l.b16 %v812
        %v954 = vunpack.c.l.b16 %v813
        %v955 = vunpack.c.h.b16 %v811
        %v956 = vunpack.c.h.b16 %v812
        %v957 = vunpack.c.h.b16 %v813
        %v958 = vpack.c.b16 %v863, %v862
        %v959 = vpack.c.b16 %v864, %v864
        %v960 = vpack.c.b16 %v866, %v865
        %v961 = vpack.c.b16 %v867, %v867
        %v962 = vpack.c.b16 %v869, %v868
        %v963 = vpack.c.b16 %v870, %v870
        %v964 = vpack.c.b16 %v872, %v871
        %v965 = vpack.c.b16 %v873, %v873
        %v966 = vpack.c.b16 %v875, %v874
        %v967 = vpack.c.b16 %v876, %v876
        %v968 = vpack.c.b16 %v878, %v877
        %v969 = vpack.c.b16 %v879, %v879
        %v970 = vpack.c.b16 %v881, %v880
        %v971 = vpack.c.b16 %v882, %v882
        %v972 = vpack.c.b16 %v884, %v883
        %v973 = vpack.c.b16 %v885, %v885
        %v974 = vpack.c.b16 %v887, %v886
        %v975 = vpack.c.b16 %v888, %v888
        %v976 = vpack.c.b16 %v890, %v889
        %v977 = vpack.c.b16 %v891, %v891
        %v978 = vpack.c.b16 %v893, %v892
        %v979 = vpack.c.b16 %v894, %v894
        %v980 = vpack.c.b16 %v896, %v895
        %v981 = vpack.c.b16 %v897, %v897
        %v982 = vpack.c.b16 %v899, %v898
        %v983 = vpack.c.b16 %v900, %v900
        %v984 = vpack.c.b16 %v902, %v901
        %v985 = vpack.c.b16 %v903, %v903
        %v986 = vpack.c.b16 %v905, %v904
        %v987 = vpack.c.b16 %v906, %v906
        %v988 = vpack.c.b16 %v908, %v907
        %v989 = vpack.c.b16 %v909, %v909
        %v990 = vpack.c.b16 %v911, %v910
        %v991 = vpack.c.b16 %v912, %v912
        %v992 = vpack.c.b16 %v914, %v913
        %v993 = vpack.c.b16 %v915, %v915
        %v994 = vpack.c.b16 %v917, %v916
        %v995 = vpack.c.b16 %v918, %v918
        %v996 = vpack.c.b16 %v920, %v919
        %v997 = vpack.c.b16 %v921, %v921
        %v998 = vpack.c.b16 %v923, %v922
        %v999 = vpack.c.b16 %v924, %v924
        %v1000 = vpack.c.b16 %v926, %v925
        %v1001 = vpack.c.b16 %v927, %v927
        %v1002 = vpack.c.b16 %v929, %v928
        %v1003 = vpack.c.b16 %v930, %v930
        %v1004 = vpack.c.b16 %v932, %v931
        %v1005 = vpack.c.b16 %v933, %v933
        %v1006 = vpack.c.b16 %v935, %v934
        %v1007 = vpack.c.b16 %v936, %v936
        %v1008 = vpack.c.b16 %v938, %v937
        %v1009 = vpack.c.b16 %v939, %v939
        %v1010 = vpack.c.b16 %v941, %v940
        %v1011 = vpack.c.b16 %v942, %v942
        %v1012 = vpack.c.b16 %v944, %v943
        %v1013 = vpack.c.b16 %v945, %v945
        %v1014 = vpack.c.b16 %v947, %v946
        %v1015 = vpack.c.b16 %v948, %v948
        %v1016 = vpack.c.b16 %v950, %v949
        %v1017 = vpack.c.b16 %v951, %v951
        %v1018 = vpack.c.b16 %v953, %v952
        %v1019 = vpack.c.b16 %v954, %v954
        %v1020 = vpack.c.b16 %v956, %v955
        %v1021 = vpack.c.b16 %v957, %v957
        %1086 = vst [vmem:[%s198] sm:$0xff] %v958
        %1087 = vst [vmem:[%s198 + $0x8] sm:$0xf] %v959
        %1088 = vst [vmem:[%s198 + $0xc] sm:$0xff] %v960
        %1089 = vst [vmem:[%s198 + $0x14] sm:$0xf] %v961
        %1090 = vst [vmem:[%s198 + $0x18] sm:$0xff] %v962
        %1091 = vst [vmem:[%s198 + $0x20] sm:$0xf] %v963
        %1092 = vst [vmem:[%s198 + $0x24] sm:$0xff] %v964
        %1093 = vst [vmem:[%s198 + $0x2c] sm:$0xf] %v965
        %1094 = vst [vmem:[%s198 + $0x30] sm:$0xff] %v966
        %1095 = vst [vmem:[%s198 + $0x38] sm:$0xf] %v967
        %1096 = vst [vmem:[%s198 + $0x3c] sm:$0xff] %v968
        %1097 = vst [vmem:[%s198 + $0x44] sm:$0xf] %v969
        %1098 = vst [vmem:[%s198 + $0x48] sm:$0xff] %v970
        %1099 = vst [vmem:[%s198 + $0x50] sm:$0xf] %v971
        %1100 = vst [vmem:[%s198 + $0x54] sm:$0xff] %v972
        %1101 = vst [vmem:[%s198 + $0x5c] sm:$0xf] %v973
        %1102 = vst [vmem:[%s198 + $0x60] sm:$0xff] %v974
        %1103 = vst [vmem:[%s198 + $0x68] sm:$0xf] %v975
        %1104 = vst [vmem:[%s198 + $0x6c] sm:$0xff] %v976
        %1105 = vst [vmem:[%s198 + $0x74] sm:$0xf] %v977
        %1106 = vst [vmem:[%s198 + $0x78] sm:$0xff] %v978
        %1107 = vst [vmem:[%s198 + $0x80] sm:$0xf] %v979
        %1108 = vst [vmem:[%s198 + $0x84] sm:$0xff] %v980
        %1109 = vst [vmem:[%s198 + $0x8c] sm:$0xf] %v981
        %1110 = vst [vmem:[%s198 + $0x90] sm:$0xff] %v982
        %1111 = vst [vmem:[%s198 + $0x98] sm:$0xf] %v983
        %1112 = vst [vmem:[%s198 + $0x9c] sm:$0xff] %v984
        %1113 = vst [vmem:[%s198 + $0xa4] sm:$0xf] %v985
        %1114 = vst [vmem:[%s198 + $0xa8] sm:$0xff] %v986
        %1115 = vst [vmem:[%s198 + $0xb0] sm:$0xf] %v987
        %1116 = vst [vmem:[%s198 + $0xb4] sm:$0xff] %v988
        %1117 = vst [vmem:[%s198 + $0xbc] sm:$0xf] %v989
        %1118 = vst [vmem:[%s198 + $0xc0] sm:$0xff] %v990
        %1119 = vst [vmem:[%s198 + $0xc8] sm:$0xf] %v991
        %1120 = vst [vmem:[%s198 + $0xcc] sm:$0xff] %v992
        %1121 = vst [vmem:[%s198 + $0xd4] sm:$0xf] %v993
        %1122 = vst [vmem:[%s198 + $0xd8] sm:$0xff] %v994
        %1123 = vst [vmem:[%s198 + $0xe0] sm:$0xf] %v995
        %1124 = vst [vmem:[%s198 + $0xe4] sm:$0xff] %v996
        %1125 = vst [vmem:[%s198 + $0xec] sm:$0xf] %v997
        %1126 = vst [vmem:[%s198 + $0xf0] sm:$0xff] %v998
        %1127 = vst [vmem:[%s198 + $0xf8] sm:$0xf] %v999
        %1128 = vst [vmem:[%s198 + $0xfc] sm:$0xff] %v1000
        %1129 = vst [vmem:[%s198 + $0x104] sm:$0xf] %v1001
        %1130 = vst [vmem:[%s198 + $0x108] sm:$0xff] %v1002
        %1131 = vst [vmem:[%s198 + $0x110] sm:$0xf] %v1003
        %1132 = vst [vmem:[%s198 + $0x114] sm:$0xff] %v1004
        %1133 = vst [vmem:[%s198 + $0x11c] sm:$0xf] %v1005
        %1134 = vst [vmem:[%s198 + $0x120] sm:$0xff] %v1006
        %1135 = vst [vmem:[%s198 + $0x128] sm:$0xf] %v1007
        %1136 = vst [vmem:[%s198 + $0x12c] sm:$0xff] %v1008
        %1137 = vst [vmem:[%s198 + $0x134] sm:$0xf] %v1009
        %1138 = vst [vmem:[%s198 + $0x138] sm:$0xff] %v1010
        %1139 = vst [vmem:[%s198 + $0x140] sm:$0xf] %v1011
        %1140 = vst [vmem:[%s198 + $0x144] sm:$0xff] %v1012
        %1141 = vst [vmem:[%s198 + $0x14c] sm:$0xf] %v1013
        %1142 = vst [vmem:[%s198 + $0x150] sm:$0xff] %v1014
        %1143 = vst [vmem:[%s198 + $0x158] sm:$0xf] %v1015
        %1144 = vst [vmem:[%s198 + $0x15c] sm:$0xff] %v1016
        %1145 = vst [vmem:[%s198 + $0x164] sm:$0xf] %v1017
        %1146 = vst [vmem:[%s198 + $0x168] sm:$0xff] %v1018
        %1147 = vst [vmem:[%s198 + $0x170] sm:$0xf] %v1019
        %1148 = vst [vmem:[%s198 + $0x174] sm:$0xff] %v1020
        %1149 = vst [vmem:[%s198 + $0x17c] sm:$0xf] %v1021
        %s1150 = sand.u32 %s94, 1
        %s1151 = scalar_lea.sflag [#allocation4], %s1150
        %s1152 = sand.u32 %s94, 1
        %s1153 = smul.addr %s1152, 384
        %s1154 = scalar_lea.vmem [#allocation7], %s1153
        // Predicated region
        $region37: #{tpu_custom_call.1} parent=27 // pred_check
          %p1155 = pneg %p104
        $region38: #{tpu_custom_call.1} parent=27 // pred_check_branch
          %1157 = sbr.rel (%p1155) target = $region40
        $region39: #{tpu_custom_call.1} parent=27 // pred_region
          %s1158 = smul.u32 32, %s25
          %s1159 = smul.u32 3, %s24
          %s1161 = ssub.s32 6144, 6144
          %1162 = vsyncadd %s1151, %s1161
          %s1163 = smul.addr %s1158, 3
          %s1164 = sadd.s32 %s1159, %s1163
          %s1165 = smul.addr %s1164, 64
          %s1166 = scalar_lea.hbm %s2, %s1165
          %s1167 = sshll.u32 %s1154, 4
          %s1168 = int_to_ptr.vmem [resolvable:$true] %s1167
          %1173 = dma.vmem_to_hbm [thread:$0]  %s1168, 6144, %s1166, %s1151, 192, 192, 12
        $region40: #{tpu_custom_call.1} parent=27 // pred_fallthru
          _
      $region28: #{tpu_custom_call.1} parent=5 // pred_fallthru
        _
      %p1174 = scmp.le.s32.totalorder 2, %s15
      // Predicated region
      $region41: #{tpu_custom_call.1} parent=5 // pred_check
        %p1175 = pneg %p1174
      $region42: #{tpu_custom_call.1} parent=5 // pred_check_branch
        %1177 = sbr.rel (%p1175) target = $region44
      $region43: #{tpu_custom_call.1} parent=5 // pred_region
        %s1178 = ssub.s32 %s15, 2
        // Predicated region
        $region45: #{tpu_custom_call.1} parent=43 // pred_check
          %p1179 = pneg %p110
        $region46: #{tpu_custom_call.1} parent=43 // pred_check_branch
          %1181 = sbr.rel (%p1179) target = $region48
        $region47: #{tpu_custom_call.1} parent=43 // pred_region
          %s1182 = sand.u32 %s95, 1
          %s1183 = scalar_lea.sflag [#allocation4], %s1182
          %s1184 = sand.u32 %s95, 1
          %s1185 = smul.addr %s1184, 384
          %s1186 = scalar_lea.vmem [#allocation7], %s1185
          %1187 = dma.done %s1183, 6144
        $region48: #{tpu_custom_call.1} parent=43 // pred_fallthru
          _
      $region44: #{tpu_custom_call.1} parent=5 // pred_fallthru
        _
    $region6: #{tpu_custom_call.1} parent=1 // loop_footer
      %s19 = sadd.s32 1, %s15
    $region7: #{tpu_custom_call.1} parent=1 // loop_footer_branch
      %14 = sbr.rel target = $region3
    $region8: #{tpu_custom_call.1} parent=1 // loop_exit
      _
    %1188 = vsyncpa [#allocation3], 1
    %s1189 = scalar_lea.sflag [#allocation3], 1
    %1190 = vsyncpa %s1189, 1
    %1191 = vsyncpa [#allocation6], 1
    %1192 = vsyncpa [#allocation4], 1
    %s1193 = scalar_lea.sflag [#allocation4], 1
    %1194 = vsyncpa %s1193, 1

</llo_original>
